<compile_context>
chip_gen: v7x
topology: tpu7x:2x2x1
jax: 0.10.0
libtpu: 0.0.40
codegen_flags: <defaults>
</compile_context>

<pallas_src>
import jax
import jax.numpy as jnp
from jax.experimental import pallas as pl
from jax.experimental.pallas import tpu as pltpu

_SMALL_C_MAX = 16                       # <= this: VPU/SMEM path, else MXU path
_TILE_VMEM_BUDGET = 16 * 1024 * 1024    # budget for double-buffered x/h/out tiles
_VMEM_LIMIT_BYTES = 32 * 1024 * 1024    # safe scoped limit on v5e / v6e / v7x


def _rnncell_vpu_kernel(x_ref, h_ref, wx_ref, wh_ref, b_ref, o_ref):
    # x_ref/h_ref/o_ref: (1, C, TILE_S) VMEM, spatial on lanes.
    # wx_ref/wh_ref: (C, C) SMEM scalars, [out_ch, in_ch].  b_ref: (C,) SMEM.
    x = x_ref[0]                          # (C, TILE_S)
    h = h_ref[0]
    c = x.shape[0]
    rows = []
    for co in range(c):                   # static unroll: C*2C VPU FMAs
        acc = jnp.zeros((1, x.shape[1]), jnp.float32) + b_ref[co]
        for ci in range(c):
            acc = acc + wx_ref[co, ci] * x[ci:ci + 1, :]
            acc = acc + wh_ref[co, ci] * h[ci:ci + 1, :]
        rows.append(acc)
    o_ref[0] = jnp.concatenate(rows, axis=0).astype(o_ref.dtype)


def _rnncell_mxu_kernel(x_ref, h_ref, wx_ref, wh_ref, b_ref, o_ref):
    # x_ref/h_ref/o_ref: (1, C, TILE_S) VMEM.  wx/wh: (C, C) VMEM.  b: (C, 1) VMEM.
    # Lane-dense output: spatial (TILE_S) is the matmul N dimension.
    acc = jnp.dot(wx_ref[...], x_ref[0], preferred_element_type=jnp.float32)
    acc = acc + jnp.dot(wh_ref[...], h_ref[0], preferred_element_type=jnp.float32)
    acc = acc + b_ref[...]                # (C, 1) broadcast over lanes
    o_ref[0] = acc.astype(o_ref.dtype)


def _choose_tile_s(S, C):
    """Largest lane-dense spatial tile whose double-buffered x/h/out fit the budget."""
    bytes_per_s = 3 * 2 * C * 4           # x/h/out, 2 pipeline buffers each, f32
    max_tile = max(128, (_TILE_VMEM_BUDGET // bytes_per_s) // 128 * 128)
    if S <= max_tile:
        return S                          # full spatial extent (satisfies (8,128) rule)
    t = max_tile
    while t >= 128:
        if S % t == 0:
            return t                      # multiple of 128 that divides S
        t -= 128
    # TODO(synk): pad ragged spatial extents instead of falling back to one full-S tile.
    return S


def rnn_cell(x, h, weight, bias):
    """x, h: (N, C, H, W) float32.  weight: (C, 2C, 1, 1).  bias: (C,)."""
    N, C, H, W = x.shape
    assert h.shape == x.shape
    assert weight.shape == (C, 2 * C, 1, 1)
    S = H * W
    tile_s = _choose_tile_s(S, C)
    grid = (N, S // tile_s)

    # Free layout-preserving reshapes only (no NCHW<->NHWC HBM round trips).
    x3 = x.reshape(N, C, S)
    h3 = h.reshape(N, C, S)
    w2d = weight[:, :, 0, 0]              # (C_out, 2*C_in)
    wx = w2d[:, :C]                       # (C_out, C_in), x half
    wh = w2d[:, C:]                       # (C_out, C_in), h half

    act_spec = pl.BlockSpec((1, C, tile_s), lambda n, s: (n, 0, s))
    cost = pl.CostEstimate(
        flops=2 * N * S * (2 * C) * C,
        transcendentals=0,
        bytes_accessed=(3 * N * C * S + 2 * C * C + C) * 4,
    )
    params = pltpu.CompilerParams(
        dimension_semantics=("parallel", "parallel"),
        vmem_limit_bytes=_VMEM_LIMIT_BYTES,
    )

    if C <= _SMALL_C_MAX:
        kernel = _rnncell_vpu_kernel
        w_spec = pl.BlockSpec(memory_space=pltpu.MemorySpace.SMEM)
        b_in = bias                                        # (C,) scalars in SMEM
        b_spec = pl.BlockSpec(memory_space=pltpu.MemorySpace.SMEM)
    else:
        kernel = _rnncell_mxu_kernel
        w_spec = pl.BlockSpec((C, C), lambda n, s: (0, 0))  # resident across grid
        b_in = bias.reshape(C, 1)
        b_spec = pl.BlockSpec((C, 1), lambda n, s: (0, 0))

    out3 = pl.pallas_call(
        kernel,
        out_shape=jax.ShapeDtypeStruct((N, C, S), x.dtype),
        grid=grid,
        in_specs=[act_spec, act_spec, w_spec, w_spec, b_spec],
        out_specs=act_spec,
        compiler_params=params,
        cost_estimate=cost,
    )(x3, h3, wx, wh, b_in)

    return out3.reshape(N, C, H, W)


def _reference(x, h, weight, bias):
    xh = jnp.concatenate([x, h], axis=1)                   # (N, 2C, H, W)
    return (jnp.einsum("ncij,oc->noij", xh, weight[:, :, 0, 0])
            + bias[None, :, None, None])


if __name__ == "__main__":
    key = jax.random.PRNGKey(0)
    keys = jax.random.split(key, 8)

    # Small-C path (module's typical configuration): VPU + SMEM-weight kernel.
    n_channels, N, HH, WW = 4, 2, 16, 16
    x = jax.random.normal(keys[0], (N, n_channels, HH, WW), dtype=jnp.float32)
    h = jax.random.normal(keys[1], (N, n_channels, HH, WW), dtype=jnp.float32)
    weight = 0.1 * jax.random.normal(keys[2], (n_channels, 2 * n_channels, 1, 1),
                                     dtype=jnp.float32)
    bias = 0.1 * jax.random.normal(keys[3], (n_channels,), dtype=jnp.float32)

    out = jax.block_until_ready(rnn_cell(x, h, weight, bias))
    ref = _reference(x, h, weight, bias)
    assert out.shape == (N, n_channels, HH, WW)
    assert jnp.allclose(out, ref, atol=1e-5, rtol=1e-5)

    # Larger-C path: lane-dense MXU kernel with resident VMEM weights.
    c2 = 32
    x2 = jax.random.normal(keys[4], (N, c2, HH, WW), dtype=jnp.float32)
    h2 = jax.random.normal(keys[5], (N, c2, HH, WW), dtype=jnp.float32)
    weight2 = 0.1 * jax.random.normal(keys[6], (c2, 2 * c2, 1, 1), dtype=jnp.float32)
    bias2 = 0.1 * jax.random.normal(keys[7], (c2,), dtype=jnp.float32)

    out2 = jax.block_until_ready(rnn_cell(x2, h2, weight2, bias2))
    ref2 = _reference(x2, h2, weight2, bias2)
    assert out2.shape == (N, c2, HH, WW)
    assert jnp.allclose(out2, ref2, atol=1e-4, rtol=1e-4)

    print("KERNEL_OK")
</pallas_src>

<mosaic_0001>
module attributes {stable_mosaic.version = 11 : i64} {
  func.func @_rnncell_vpu_kernel(%arg0: i32, %arg1: i32, %arg2: memref<1x4x256xf32, #tpu.memory_space<vmem>>, %arg3: memref<1x4x256xf32, #tpu.memory_space<vmem>>, %arg4: memref<4x4xf32, #tpu.memory_space<smem>>, %arg5: memref<4x4xf32, #tpu.memory_space<smem>>, %arg6: memref<4xf32, #tpu.memory_space<smem>>, %arg7: memref<1x4x256xf32, #tpu.memory_space<vmem>>) attributes {dimension_semantics = [#tpu.dimension_semantics<parallel>, #tpu.dimension_semantics<parallel>], iteration_bounds = array<i64: 2, 1>, scalar_prefetch = 0 : i64, scratch_operands = 0 : i64, tpu.core_type = #tpu.core_type<tc>, window_params = [{transform_indices = @transform_0, window_bounds = array<i64: 1, 4, 256>}, {transform_indices = @transform_1, window_bounds = array<i64: 1, 4, 256>}, {transform_indices = @transform_2, window_bounds = array<i64: 4, 4>}, {transform_indices = @transform_3, window_bounds = array<i64: 4, 4>}, {transform_indices = @transform_4, window_bounds = array<i64: 4>}, {transform_indices = @transform_5, window_bounds = array<i64: 1, 4, 256>}]} {
    %c0 = arith.constant 0 : index
    %c0_0 = arith.constant 0 : index
    %c0_1 = arith.constant 0 : index
    %0 = vector.load %arg2[%c0, %c0_0, %c0_1] : memref<1x4x256xf32, #tpu.memory_space<vmem>>, vector<1x4x256xf32>
    %1 = vector.shape_cast %0 : vector<1x4x256xf32> to vector<4x256xf32>
    %c0_2 = arith.constant 0 : index
    %c0_3 = arith.constant 0 : index
    %c0_4 = arith.constant 0 : index
    %2 = vector.load %arg3[%c0_2, %c0_3, %c0_4] : memref<1x4x256xf32, #tpu.memory_space<vmem>>, vector<1x4x256xf32>
    %3 = vector.shape_cast %2 : vector<1x4x256xf32> to vector<4x256xf32>
    %cst = arith.constant 0.000000e+00 : f32
    %4 = vector.broadcast %cst : f32 to vector<1x256xf32>
    %c0_5 = arith.constant 0 : index
    %5 = memref.load %arg6[%c0_5] : memref<4xf32, #tpu.memory_space<smem>>
    %6 = vector.broadcast %5 : f32 to vector<1x256xf32>
    %7 = arith.addf %4, %6 : vector<1x256xf32>
    %c0_6 = arith.constant 0 : index
    %c0_7 = arith.constant 0 : index
    %8 = memref.load %arg4[%c0_6, %c0_7] : memref<4x4xf32, #tpu.memory_space<smem>>
    %9 = vector.extract_strided_slice %1 {offsets = [0, 0], sizes = [1, 256], strides = [1, 1]} : vector<4x256xf32> to vector<1x256xf32>
    %10 = vector.broadcast %8 : f32 to vector<1x256xf32>
    %11 = arith.mulf %10, %9 : vector<1x256xf32>
    %12 = arith.addf %7, %11 : vector<1x256xf32>
    %c0_8 = arith.constant 0 : index
    %c0_9 = arith.constant 0 : index
    %13 = memref.load %arg5[%c0_8, %c0_9] : memref<4x4xf32, #tpu.memory_space<smem>>
    %14 = vector.extract_strided_slice %3 {offsets = [0, 0], sizes = [1, 256], strides = [1, 1]} : vector<4x256xf32> to vector<1x256xf32>
    %15 = vector.broadcast %13 : f32 to vector<1x256xf32>
    %16 = arith.mulf %15, %14 : vector<1x256xf32>
    %17 = arith.addf %12, %16 : vector<1x256xf32>
    %c0_10 = arith.constant 0 : index
    %c1 = arith.constant 1 : index
    %18 = memref.load %arg4[%c0_10, %c1] : memref<4x4xf32, #tpu.memory_space<smem>>
    %19 = vector.extract_strided_slice %1 {offsets = [1, 0], sizes = [1, 256], strides = [1, 1]} : vector<4x256xf32> to vector<1x256xf32>
    %20 = vector.broadcast %18 : f32 to vector<1x256xf32>
    %21 = arith.mulf %20, %19 : vector<1x256xf32>
    %22 = arith.addf %17, %21 : vector<1x256xf32>
    %c0_11 = arith.constant 0 : index
    %c1_12 = arith.constant 1 : index
    %23 = memref.load %arg5[%c0_11, %c1_12] : memref<4x4xf32, #tpu.memory_space<smem>>
    %24 = vector.extract_strided_slice %3 {offsets = [1, 0], sizes = [1, 256], strides = [1, 1]} : vector<4x256xf32> to vector<1x256xf32>
    %25 = vector.broadcast %23 : f32 to vector<1x256xf32>
    %26 = arith.mulf %25, %24 : vector<1x256xf32>
    %27 = arith.addf %22, %26 : vector<1x256xf32>
    %c0_13 = arith.constant 0 : index
    %c2 = arith.constant 2 : index
    %28 = memref.load %arg4[%c0_13, %c2] : memref<4x4xf32, #tpu.memory_space<smem>>
    %29 = vector.extract_strided_slice %1 {offsets = [2, 0], sizes = [1, 256], strides = [1, 1]} : vector<4x256xf32> to vector<1x256xf32>
    %30 = vector.broadcast %28 : f32 to vector<1x256xf32>
    %31 = arith.mulf %30, %29 : vector<1x256xf32>
    %32 = arith.addf %27, %31 : vector<1x256xf32>
    %c0_14 = arith.constant 0 : index
    %c2_15 = arith.constant 2 : index
    %33 = memref.load %arg5[%c0_14, %c2_15] : memref<4x4xf32, #tpu.memory_space<smem>>
    %34 = vector.extract_strided_slice %3 {offsets = [2, 0], sizes = [1, 256], strides = [1, 1]} : vector<4x256xf32> to vector<1x256xf32>
    %35 = vector.broadcast %33 : f32 to vector<1x256xf32>
    %36 = arith.mulf %35, %34 : vector<1x256xf32>
    %37 = arith.addf %32, %36 : vector<1x256xf32>
    %c0_16 = arith.constant 0 : index
    %c3 = arith.constant 3 : index
    %38 = memref.load %arg4[%c0_16, %c3] : memref<4x4xf32, #tpu.memory_space<smem>>
    %39 = vector.extract_strided_slice %1 {offsets = [3, 0], sizes = [1, 256], strides = [1, 1]} : vector<4x256xf32> to vector<1x256xf32>
    %40 = vector.broadcast %38 : f32 to vector<1x256xf32>
    %41 = arith.mulf %40, %39 : vector<1x256xf32>
    %42 = arith.addf %37, %41 : vector<1x256xf32>
    %c0_17 = arith.constant 0 : index
    %c3_18 = arith.constant 3 : index
    %43 = memref.load %arg5[%c0_17, %c3_18] : memref<4x4xf32, #tpu.memory_space<smem>>
    %44 = vector.extract_strided_slice %3 {offsets = [3, 0], sizes = [1, 256], strides = [1, 1]} : vector<4x256xf32> to vector<1x256xf32>
    %45 = vector.broadcast %43 : f32 to vector<1x256xf32>
    %46 = arith.mulf %45, %44 : vector<1x256xf32>
    %47 = arith.addf %42, %46 : vector<1x256xf32>
    %cst_19 = arith.constant 0.000000e+00 : f32
    %48 = vector.broadcast %cst_19 : f32 to vector<1x256xf32>
    %c1_20 = arith.constant 1 : index
    %49 = memref.load %arg6[%c1_20] : memref<4xf32, #tpu.memory_space<smem>>
    %50 = vector.broadcast %49 : f32 to vector<1x256xf32>
    %51 = arith.addf %48, %50 : vector<1x256xf32>
    %c1_21 = arith.constant 1 : index
    %c0_22 = arith.constant 0 : index
    %52 = memref.load %arg4[%c1_21, %c0_22] : memref<4x4xf32, #tpu.memory_space<smem>>
    %53 = vector.extract_strided_slice %1 {offsets = [0, 0], sizes = [1, 256], strides = [1, 1]} : vector<4x256xf32> to vector<1x256xf32>
    %54 = vector.broadcast %52 : f32 to vector<1x256xf32>
    %55 = arith.mulf %54, %53 : vector<1x256xf32>
    %56 = arith.addf %51, %55 : vector<1x256xf32>
    %c1_23 = arith.constant 1 : index
    %c0_24 = arith.constant 0 : index
    %57 = memref.load %arg5[%c1_23, %c0_24] : memref<4x4xf32, #tpu.memory_space<smem>>
    %58 = vector.extract_strided_slice %3 {offsets = [0, 0], sizes = [1, 256], strides = [1, 1]} : vector<4x256xf32> to vector<1x256xf32>
    %59 = vector.broadcast %57 : f32 to vector<1x256xf32>
    %60 = arith.mulf %59, %58 : vector<1x256xf32>
    %61 = arith.addf %56, %60 : vector<1x256xf32>
    %c1_25 = arith.constant 1 : index
    %c1_26 = arith.constant 1 : index
    %62 = memref.load %arg4[%c1_25, %c1_26] : memref<4x4xf32, #tpu.memory_space<smem>>
    %63 = vector.extract_strided_slice %1 {offsets = [1, 0], sizes = [1, 256], strides = [1, 1]} : vector<4x256xf32> to vector<1x256xf32>
    %64 = vector.broadcast %62 : f32 to vector<1x256xf32>
    %65 = arith.mulf %64, %63 : vector<1x256xf32>
    %66 = arith.addf %61, %65 : vector<1x256xf32>
    %c1_27 = arith.constant 1 : index
    %c1_28 = arith.constant 1 : index
    %67 = memref.load %arg5[%c1_27, %c1_28] : memref<4x4xf32, #tpu.memory_space<smem>>
    %68 = vector.extract_strided_slice %3 {offsets = [1, 0], sizes = [1, 256], strides = [1, 1]} : vector<4x256xf32> to vector<1x256xf32>
    %69 = vector.broadcast %67 : f32 to vector<1x256xf32>
    %70 = arith.mulf %69, %68 : vector<1x256xf32>
    %71 = arith.addf %66, %70 : vector<1x256xf32>
    %c1_29 = arith.constant 1 : index
    %c2_30 = arith.constant 2 : index
    %72 = memref.load %arg4[%c1_29, %c2_30] : memref<4x4xf32, #tpu.memory_space<smem>>
    %73 = vector.extract_strided_slice %1 {offsets = [2, 0], sizes = [1, 256], strides = [1, 1]} : vector<4x256xf32> to vector<1x256xf32>
    %74 = vector.broadcast %72 : f32 to vector<1x256xf32>
    %75 = arith.mulf %74, %73 : vector<1x256xf32>
    %76 = arith.addf %71, %75 : vector<1x256xf32>
    %c1_31 = arith.constant 1 : index
    %c2_32 = arith.constant 2 : index
    %77 = memref.load %arg5[%c1_31, %c2_32] : memref<4x4xf32, #tpu.memory_space<smem>>
    %78 = vector.extract_strided_slice %3 {offsets = [2, 0], sizes = [1, 256], strides = [1, 1]} : vector<4x256xf32> to vector<1x256xf32>
    %79 = vector.broadcast %77 : f32 to vector<1x256xf32>
    %80 = arith.mulf %79, %78 : vector<1x256xf32>
    %81 = arith.addf %76, %80 : vector<1x256xf32>
    %c1_33 = arith.constant 1 : index
    %c3_34 = arith.constant 3 : index
    %82 = memref.load %arg4[%c1_33, %c3_34] : memref<4x4xf32, #tpu.memory_space<smem>>
    %83 = vector.extract_strided_slice %1 {offsets = [3, 0], sizes = [1, 256], strides = [1, 1]} : vector<4x256xf32> to vector<1x256xf32>
    %84 = vector.broadcast %82 : f32 to vector<1x256xf32>
    %85 = arith.mulf %84, %83 : vector<1x256xf32>
    %86 = arith.addf %81, %85 : vector<1x256xf32>
    %c1_35 = arith.constant 1 : index
    %c3_36 = arith.constant 3 : index
    %87 = memref.load %arg5[%c1_35, %c3_36] : memref<4x4xf32, #tpu.memory_space<smem>>
    %88 = vector.extract_strided_slice %3 {offsets = [3, 0], sizes = [1, 256], strides = [1, 1]} : vector<4x256xf32> to vector<1x256xf32>
    %89 = vector.broadcast %87 : f32 to vector<1x256xf32>
    %90 = arith.mulf %89, %88 : vector<1x256xf32>
    %91 = arith.addf %86, %90 : vector<1x256xf32>
    %cst_37 = arith.constant 0.000000e+00 : f32
    %92 = vector.broadcast %cst_37 : f32 to vector<1x256xf32>
    %c2_38 = arith.constant 2 : index
    %93 = memref.load %arg6[%c2_38] : memref<4xf32, #tpu.memory_space<smem>>
    %94 = vector.broadcast %93 : f32 to vector<1x256xf32>
    %95 = arith.addf %92, %94 : vector<1x256xf32>
    %c2_39 = arith.constant 2 : index
    %c0_40 = arith.constant 0 : index
    %96 = memref.load %arg4[%c2_39, %c0_40] : memref<4x4xf32, #tpu.memory_space<smem>>
    %97 = vector.extract_strided_slice %1 {offsets = [0, 0], sizes = [1, 256], strides = [1, 1]} : vector<4x256xf32> to vector<1x256xf32>
    %98 = vector.broadcast %96 : f32 to vector<1x256xf32>
    %99 = arith.mulf %98, %97 : vector<1x256xf32>
    %100 = arith.addf %95, %99 : vector<1x256xf32>
    %c2_41 = arith.constant 2 : index
    %c0_42 = arith.constant 0 : index
    %101 = memref.load %arg5[%c2_41, %c0_42] : memref<4x4xf32, #tpu.memory_space<smem>>
    %102 = vector.extract_strided_slice %3 {offsets = [0, 0], sizes = [1, 256], strides = [1, 1]} : vector<4x256xf32> to vector<1x256xf32>
    %103 = vector.broadcast %101 : f32 to vector<1x256xf32>
    %104 = arith.mulf %103, %102 : vector<1x256xf32>
    %105 = arith.addf %100, %104 : vector<1x256xf32>
    %c2_43 = arith.constant 2 : index
    %c1_44 = arith.constant 1 : index
    %106 = memref.load %arg4[%c2_43, %c1_44] : memref<4x4xf32, #tpu.memory_space<smem>>
    %107 = vector.extract_strided_slice %1 {offsets = [1, 0], sizes = [1, 256], strides = [1, 1]} : vector<4x256xf32> to vector<1x256xf32>
    %108 = vector.broadcast %106 : f32 to vector<1x256xf32>
    %109 = arith.mulf %108, %107 : vector<1x256xf32>
    %110 = arith.addf %105, %109 : vector<1x256xf32>
    %c2_45 = arith.constant 2 : index
    %c1_46 = arith.constant 1 : index
    %111 = memref.load %arg5[%c2_45, %c1_46] : memref<4x4xf32, #tpu.memory_space<smem>>
    %112 = vector.extract_strided_slice %3 {offsets = [1, 0], sizes = [1, 256], strides = [1, 1]} : vector<4x256xf32> to vector<1x256xf32>
    %113 = vector.broadcast %111 : f32 to vector<1x256xf32>
    %114 = arith.mulf %113, %112 : vector<1x256xf32>
    %115 = arith.addf %110, %114 : vector<1x256xf32>
    %c2_47 = arith.constant 2 : index
    %c2_48 = arith.constant 2 : index
    %116 = memref.load %arg4[%c2_47, %c2_48] : memref<4x4xf32, #tpu.memory_space<smem>>
    %117 = vector.extract_strided_slice %1 {offsets = [2, 0], sizes = [1, 256], strides = [1, 1]} : vector<4x256xf32> to vector<1x256xf32>
    %118 = vector.broadcast %116 : f32 to vector<1x256xf32>
    %119 = arith.mulf %118, %117 : vector<1x256xf32>
    %120 = arith.addf %115, %119 : vector<1x256xf32>
    %c2_49 = arith.constant 2 : index
    %c2_50 = arith.constant 2 : index
    %121 = memref.load %arg5[%c2_49, %c2_50] : memref<4x4xf32, #tpu.memory_space<smem>>
    %122 = vector.extract_strided_slice %3 {offsets = [2, 0], sizes = [1, 256], strides = [1, 1]} : vector<4x256xf32> to vector<1x256xf32>
    %123 = vector.broadcast %121 : f32 to vector<1x256xf32>
    %124 = arith.mulf %123, %122 : vector<1x256xf32>
    %125 = arith.addf %120, %124 : vector<1x256xf32>
    %c2_51 = arith.constant 2 : index
    %c3_52 = arith.constant 3 : index
    %126 = memref.load %arg4[%c2_51, %c3_52] : memref<4x4xf32, #tpu.memory_space<smem>>
    %127 = vector.extract_strided_slice %1 {offsets = [3, 0], sizes = [1, 256], strides = [1, 1]} : vector<4x256xf32> to vector<1x256xf32>
    %128 = vector.broadcast %126 : f32 to vector<1x256xf32>
    %129 = arith.mulf %128, %127 : vector<1x256xf32>
    %130 = arith.addf %125, %129 : vector<1x256xf32>
    %c2_53 = arith.constant 2 : index
    %c3_54 = arith.constant 3 : index
    %131 = memref.load %arg5[%c2_53, %c3_54] : memref<4x4xf32, #tpu.memory_space<smem>>
    %132 = vector.extract_strided_slice %3 {offsets = [3, 0], sizes = [1, 256], strides = [1, 1]} : vector<4x256xf32> to vector<1x256xf32>
    %133 = vector.broadcast %131 : f32 to vector<1x256xf32>
    %134 = arith.mulf %133, %132 : vector<1x256xf32>
    %135 = arith.addf %130, %134 : vector<1x256xf32>
    %cst_55 = arith.constant 0.000000e+00 : f32
    %136 = vector.broadcast %cst_55 : f32 to vector<1x256xf32>
    %c3_56 = arith.constant 3 : index
    %137 = memref.load %arg6[%c3_56] : memref<4xf32, #tpu.memory_space<smem>>
    %138 = vector.broadcast %137 : f32 to vector<1x256xf32>
    %139 = arith.addf %136, %138 : vector<1x256xf32>
    %c3_57 = arith.constant 3 : index
    %c0_58 = arith.constant 0 : index
    %140 = memref.load %arg4[%c3_57, %c0_58] : memref<4x4xf32, #tpu.memory_space<smem>>
    %141 = vector.extract_strided_slice %1 {offsets = [0, 0], sizes = [1, 256], strides = [1, 1]} : vector<4x256xf32> to vector<1x256xf32>
    %142 = vector.broadcast %140 : f32 to vector<1x256xf32>
    %143 = arith.mulf %142, %141 : vector<1x256xf32>
    %144 = arith.addf %139, %143 : vector<1x256xf32>
    %c3_59 = arith.constant 3 : index
    %c0_60 = arith.constant 0 : index
    %145 = memref.load %arg5[%c3_59, %c0_60] : memref<4x4xf32, #tpu.memory_space<smem>>
    %146 = vector.extract_strided_slice %3 {offsets = [0, 0], sizes = [1, 256], strides = [1, 1]} : vector<4x256xf32> to vector<1x256xf32>
    %147 = vector.broadcast %145 : f32 to vector<1x256xf32>
    %148 = arith.mulf %147, %146 : vector<1x256xf32>
    %149 = arith.addf %144, %148 : vector<1x256xf32>
    %c3_61 = arith.constant 3 : index
    %c1_62 = arith.constant 1 : index
    %150 = memref.load %arg4[%c3_61, %c1_62] : memref<4x4xf32, #tpu.memory_space<smem>>
    %151 = vector.extract_strided_slice %1 {offsets = [1, 0], sizes = [1, 256], strides = [1, 1]} : vector<4x256xf32> to vector<1x256xf32>
    %152 = vector.broadcast %150 : f32 to vector<1x256xf32>
    %153 = arith.mulf %152, %151 : vector<1x256xf32>
    %154 = arith.addf %149, %153 : vector<1x256xf32>
    %c3_63 = arith.constant 3 : index
    %c1_64 = arith.constant 1 : index
    %155 = memref.load %arg5[%c3_63, %c1_64] : memref<4x4xf32, #tpu.memory_space<smem>>
    %156 = vector.extract_strided_slice %3 {offsets = [1, 0], sizes = [1, 256], strides = [1, 1]} : vector<4x256xf32> to vector<1x256xf32>
    %157 = vector.broadcast %155 : f32 to vector<1x256xf32>
    %158 = arith.mulf %157, %156 : vector<1x256xf32>
    %159 = arith.addf %154, %158 : vector<1x256xf32>
    %c3_65 = arith.constant 3 : index
    %c2_66 = arith.constant 2 : index
    %160 = memref.load %arg4[%c3_65, %c2_66] : memref<4x4xf32, #tpu.memory_space<smem>>
    %161 = vector.extract_strided_slice %1 {offsets = [2, 0], sizes = [1, 256], strides = [1, 1]} : vector<4x256xf32> to vector<1x256xf32>
    %162 = vector.broadcast %160 : f32 to vector<1x256xf32>
    %163 = arith.mulf %162, %161 : vector<1x256xf32>
    %164 = arith.addf %159, %163 : vector<1x256xf32>
    %c3_67 = arith.constant 3 : index
    %c2_68 = arith.constant 2 : index
    %165 = memref.load %arg5[%c3_67, %c2_68] : memref<4x4xf32, #tpu.memory_space<smem>>
    %166 = vector.extract_strided_slice %3 {offsets = [2, 0], sizes = [1, 256], strides = [1, 1]} : vector<4x256xf32> to vector<1x256xf32>
    %167 = vector.broadcast %165 : f32 to vector<1x256xf32>
    %168 = arith.mulf %167, %166 : vector<1x256xf32>
    %169 = arith.addf %164, %168 : vector<1x256xf32>
    %c3_69 = arith.constant 3 : index
    %c3_70 = arith.constant 3 : index
    %170 = memref.load %arg4[%c3_69, %c3_70] : memref<4x4xf32, #tpu.memory_space<smem>>
    %171 = vector.extract_strided_slice %1 {offsets = [3, 0], sizes = [1, 256], strides = [1, 1]} : vector<4x256xf32> to vector<1x256xf32>
    %172 = vector.broadcast %170 : f32 to vector<1x256xf32>
    %173 = arith.mulf %172, %171 : vector<1x256xf32>
    %174 = arith.addf %169, %173 : vector<1x256xf32>
    %c3_71 = arith.constant 3 : index
    %c3_72 = arith.constant 3 : index
    %175 = memref.load %arg5[%c3_71, %c3_72] : memref<4x4xf32, #tpu.memory_space<smem>>
    %176 = vector.extract_strided_slice %3 {offsets = [3, 0], sizes = [1, 256], strides = [1, 1]} : vector<4x256xf32> to vector<1x256xf32>
    %177 = vector.broadcast %175 : f32 to vector<1x256xf32>
    %178 = arith.mulf %177, %176 : vector<1x256xf32>
    %179 = arith.addf %174, %178 : vector<1x256xf32>
    %180 = tpu.concatenate %47, %91, %135, %179 in 0 : vector<1x256xf32>, vector<1x256xf32>, vector<1x256xf32>, vector<1x256xf32> -> vector<4x256xf32>
    %c0_73 = arith.constant 0 : index
    %c0_74 = arith.constant 0 : index
    %c0_75 = arith.constant 0 : index
    %181 = vector.load %arg7[%c0_73, %c0_74, %c0_75] : memref<1x4x256xf32, #tpu.memory_space<vmem>>, vector<1x4x256xf32>
    %182 = vector.shape_cast %181 : vector<1x4x256xf32> to vector<4x256xf32>
    %183 = vector.shape_cast %180 : vector<4x256xf32> to vector<1x4x256xf32>
    tpu.vector_store %arg7[%c0_73, %c0_74, %c0_75], %183 {strides = array<i32>} : memref<1x4x256xf32, #tpu.memory_space<vmem>>, vector<1x4x256xf32>,
    return
  }
  func.func @transform_0(%arg0: i32, %arg1: i32) -> (i32, i32, i32) {
    %c0_i32 = arith.constant 0 : i32
    %c0_i32_0 = arith.constant 0 : i32
    return %arg0, %c0_i32, %arg1 : i32, i32, i32
  }
  func.func @transform_1(%arg0: i32, %arg1: i32) -> (i32, i32, i32) {
    %c0_i32 = arith.constant 0 : i32
    %c0_i32_0 = arith.constant 0 : i32
    return %arg0, %c0_i32, %arg1 : i32, i32, i32
  }
  func.func @transform_2(%arg0: i32, %arg1: i32) -> (i32, i32) {
    %c0_i32 = arith.constant 0 : i32
    %c0_i32_0 = arith.constant 0 : i32
    %c0_i32_1 = arith.constant 0 : i32
    return %c0_i32, %c0_i32_0 : i32, i32
  }
  func.func @transform_3(%arg0: i32, %arg1: i32) -> (i32, i32) {
    %c0_i32 = arith.constant 0 : i32
    %c0_i32_0 = arith.constant 0 : i32
    %c0_i32_1 = arith.constant 0 : i32
    return %c0_i32, %c0_i32_0 : i32, i32
  }
  func.func @transform_4(%arg0: i32, %arg1: i32) -> i32 {
    %c0_i32 = arith.constant 0 : i32
    %c0_i32_0 = arith.constant 0 : i32
    return %c0_i32 : i32
  }
  func.func @transform_5(%arg0: i32, %arg1: i32) -> (i32, i32, i32) {
    %c0_i32 = arith.constant 0 : i32
    %c0_i32_0 = arith.constant 0 : i32
    return %arg0, %c0_i32, %arg1 : i32, i32, i32
  }
}

</mosaic_0001>

<llo_original>
// kernel: tpu_custom_call.1
$region0: #{tpu_custom_call.1}
  #allocation0 [shape = 'u32[]', space=smem, size = 0x4, offset = 0x4, fixed_abs, tag = 'smem constant byte address 0x4 - core index']
  #allocation1 [shape = 'u32[144,128]{1,0:T(1,128)}', space=vmem, size = 0x12000, scoped, tag = 'internal scratch']
  %s0 = inlined_call_operand.hbm [shape: f32[2,4,256], index: 0, kind: input, shape index: {}]
  %s1 = inlined_call_operand.hbm [shape: f32[2,4,256], index: 1, kind: input, shape index: {}]
  %s2 = inlined_call_operand.vmem [shape: f32[4,4], index: 2, kind: input, shape index: {}]
  %s3 = inlined_call_operand.vmem [shape: f32[4,4], index: 3, kind: input, shape index: {}]
  %s4 = inlined_call_operand.vmem [shape: f32[4], index: 4, kind: input, shape index: {}]
  %s5 = inlined_call_operand.hbm [shape: f32[2,4,256], index: 5, kind: output, shape index: {}]
  %s6 = sld [smem:[#allocation0]]
  $region73: #{tpu_custom_call.1} parent=0
    _
  %s8 = ssub.s32 1, %s6
  %s9 = scalar_select 0, %s8, %s6
  $region1: #{tpu_custom_call.1} parent=0
    #allocation2 [shape = 'u8[8192]{0}', space=vmem, size = 0x2000, scoped, tag = 'input window, operand 0']
    #allocation3 [shape = 's32[2]{0}', space=sflag, size = 0x8, scoped, tag = 'scoped memory for tpu_custom_call.1']
    #allocation4 [shape = 's32[2]{0}', space=sflag, size = 0x8, scoped, tag = 'scoped memory for tpu_custom_call.1']
    #allocation5 [shape = 's32[2]{0}', space=sflag, size = 0x8, scoped, tag = 'scoped memory for tpu_custom_call.1']
    #allocation6 [shape = 'u8[8192]{0}', space=vmem, size = 0x2000, scoped, tag = 'input window, operand 1']
    #allocation7 [shape = 's32[2]{0}', space=sflag, size = 0x8, scoped, tag = 'scoped memory for tpu_custom_call.1']
    #allocation8 [shape = 'u8[2048]{0}', space=smem, size = 0x800, scoped, tag = 'input window, operand 2, single buffered']
    #allocation9 [shape = 'u8[2048]{0}', space=smem, size = 0x800, scoped, tag = 'input window, operand 3, single buffered']
    #allocation10 [shape = 's32[1]{0}', space=sflag, size = 0x4, scoped, tag = 'scoped memory for tpu_custom_call.1']
    #allocation11 [shape = 'u8[512]{0}', space=smem, size = 0x200, scoped, tag = 'input window, operand 4, single buffered']
    #allocation12 [shape = 'u8[8192]{0}', space=vmem, size = 0x2000, scoped, tag = 'output window, operand 0']
    %10 = vsyncpa [#allocation3], 0
    %s11 = scalar_lea.sflag [#allocation3], 1
    %12 = vsyncpa %s11, 0
    %13 = vsyncpa [#allocation7], 0
    %s14 = scalar_lea.sflag [#allocation7], 1
    %15 = vsyncpa %s14, 0
    %16 = vsyncpa [#allocation5], 0
    %17 = vsyncpa [#allocation10], 0
    %18 = vsyncpa [#allocation4], 0
    %s19 = scalar_lea.sflag [#allocation4], 1
    %20 = vsyncpa %s19, 0
    loop: start=0, step=1, limit=4
    $region2: #{tpu_custom_call.1} parent=1 // loop_pre_header
      _
    $region3: #{tpu_custom_call.1} parent=1 // loop_header
      %s22 = sphi 0, %s26
      %p23 = scmp.ge.s32.totalorder %s22, 4
      %s29 = sphi 0, %s41
      %s30 = sphi 0, %s37
      %s31 = sphi 0, %s29
      %s32 = sphi 0, %s30
      %s33 = sphi 0, %s31
      %s34 = sphi 0, %s32
      %s46 = sphi 0, %s48
      %s49 = sphi 0, %s46
      %s50 = sphi 0, %s49
      %s66 = sphi 0, %s50
      %s74 = sphi 0, %s76
      %s77 = sphi 0, %s74
      %s78 = sphi 0, %s77
      %s94 = sphi 0, %s78
      %s98 = sphi 0, %s98
      %s100 = sphi 0, %s98
      %s101 = sphi 0, %s100
      %s115 = sphi 0, %s101
      %s119 = sphi 0, %s119
      %s121 = sphi 0, %s119
      %s122 = sphi 0, %s121
      %s136 = sphi 0, %s122
      %s140 = sphi 0, %s140
      %s142 = sphi 0, %s140
      %s143 = sphi 0, %s142
      %s157 = sphi 0, %s143
      %s165 = sphi 0, %s167
      %s168 = sphi 0, %s165
      %s169 = sphi 0, %s168
      %s185 = sphi 0, %s169
    $region4: #{tpu_custom_call.1} parent=1 // loop_header_branch
      %25 = sbr.rel (%p23) target = $region8
    $region5: #{tpu_custom_call.1} parent=1 // loop_body
      %s27 = ssub.s32 %s22, 1
      %s28 = ssub.s32 %s22, 2
      %s35 = sadd.s32 1, %s30
      %p36 = scmp.ge.s32.totalorder %s35, 1
      %s37 = scalar_select %p36, 0, %s35
      %s38 = sadd.s32 1, %s29
      %s39 = scalar_select %p36, %s38, %s29
      %p40 = scmp.ge.s32.totalorder %s39, 2
      %s41 = scalar_select %p40, 0, %s39
      %s42 = ssub.s32 %s29, %s41
      %s43 = ssub.s32 %s30, %s37
      %s44 = sor.u32 %s42, %s43
      %p45 = scmp.eq.s32.totalorder %s44, 0
      %s47 = sadd.s32 %s46, 1
      %s48 = scalar_select %p45, %s46, %s47
      %p51 = pneg %p45
      %p52 = scmp.eq.s32.totalorder %s22, 1
      %p53 = por %p51, %p52
      %p54 = scmp.ne.s32.totalorder %s46, %s49
      %p55 = scmp.eq.s32.totalorder %s22, 0
      %p56 = por %p54, %p55
      %p57 = scmp.ne.s32.totalorder %s46, %s49
      %p58 = scmp.eq.s32.totalorder %s27, 1
      %p59 = por %p57, %p58
      %p60 = scmp.ne.s32.totalorder %s49, %s50
      %p61 = scmp.eq.s32.totalorder %s27, 0
      %p62 = por %p60, %p61
      %p63 = scmp.ne.s32.totalorder %s49, %s50
      %p64 = scmp.eq.s32.totalorder %s28, 1
      %p65 = por %p63, %p64
      %p67 = scmp.ne.s32.totalorder %s50, %s66
      %p68 = scmp.eq.s32.totalorder %s28, 0
      %p69 = por %p67, %p68
      %s70 = ssub.s32 %s29, %s41
      %s71 = ssub.s32 %s30, %s37
      %s72 = sor.u32 %s70, %s71
      %p73 = scmp.eq.s32.totalorder %s72, 0
      %s75 = sadd.s32 %s74, 1
      %s76 = scalar_select %p73, %s74, %s75
      %p79 = pneg %p73
      %p80 = scmp.eq.s32.totalorder %s22, 1
      %p81 = por %p79, %p80
      %p82 = scmp.ne.s32.totalorder %s74, %s77
      %p83 = scmp.eq.s32.totalorder %s22, 0
      %p84 = por %p82, %p83
      %p85 = scmp.ne.s32.totalorder %s74, %s77
      %p86 = scmp.eq.s32.totalorder %s27, 1
      %p87 = por %p85, %p86
      %p88 = scmp.ne.s32.totalorder %s77, %s78
      %p89 = scmp.eq.s32.totalorder %s27, 0
      %p90 = por %p88, %p89
      %p91 = scmp.ne.s32.totalorder %s77, %s78
      %p92 = scmp.eq.s32.totalorder %s28, 1
      %p93 = por %p91, %p92
      %p95 = scmp.ne.s32.totalorder %s78, %s94
      %p96 = scmp.eq.s32.totalorder %s28, 0
      %p97 = por %p95, %p96
      %s99 = sadd.s32 %s98, 1
      %p102 = scmp.eq.s32.totalorder %s22, 1
      %p103 = scmp.ne.s32.totalorder %s98, %s100
      %p104 = scmp.eq.s32.totalorder %s22, 0
      %p105 = por %p103, %p104
      %p106 = scmp.ne.s32.totalorder %s98, %s100
      %p107 = scmp.eq.s32.totalorder %s27, 1
      %p108 = por %p106, %p107
      %p109 = scmp.ne.s32.totalorder %s100, %s101
      %p110 = scmp.eq.s32.totalorder %s27, 0
      %p111 = por %p109, %p110
      %p112 = scmp.ne.s32.totalorder %s100, %s101
      %p113 = scmp.eq.s32.totalorder %s28, 1
      %p114 = por %p112, %p113
      %p116 = scmp.ne.s32.totalorder %s101, %s115
      %p117 = scmp.eq.s32.totalorder %s28, 0
      %p118 = por %p116, %p117
      %s120 = sadd.s32 %s119, 1
      %p123 = scmp.eq.s32.totalorder %s22, 1
      %p124 = scmp.ne.s32.totalorder %s119, %s121
      %p125 = scmp.eq.s32.totalorder %s22, 0
      %p126 = por %p124, %p125
      %p127 = scmp.ne.s32.totalorder %s119, %s121
      %p128 = scmp.eq.s32.totalorder %s27, 1
      %p129 = por %p127, %p128
      %p130 = scmp.ne.s32.totalorder %s121, %s122
      %p131 = scmp.eq.s32.totalorder %s27, 0
      %p132 = por %p130, %p131
      %p133 = scmp.ne.s32.totalorder %s121, %s122
      %p134 = scmp.eq.s32.totalorder %s28, 1
      %p135 = por %p133, %p134
      %p137 = scmp.ne.s32.totalorder %s122, %s136
      %p138 = scmp.eq.s32.totalorder %s28, 0
      %p139 = por %p137, %p138
      %s141 = sadd.s32 %s140, 1
      %p144 = scmp.eq.s32.totalorder %s22, 1
      %p145 = scmp.ne.s32.totalorder %s140, %s142
      %p146 = scmp.eq.s32.totalorder %s22, 0
      %p147 = por %p145, %p146
      %p148 = scmp.ne.s32.totalorder %s140, %s142
      %p149 = scmp.eq.s32.totalorder %s27, 1
      %p150 = por %p148, %p149
      %p151 = scmp.ne.s32.totalorder %s142, %s143
      %p152 = scmp.eq.s32.totalorder %s27, 0
      %p153 = por %p151, %p152
      %p154 = scmp.ne.s32.totalorder %s142, %s143
      %p155 = scmp.eq.s32.totalorder %s28, 1
      %p156 = por %p154, %p155
      %p158 = scmp.ne.s32.totalorder %s143, %s157
      %p159 = scmp.eq.s32.totalorder %s28, 0
      %p160 = por %p158, %p159
      %s161 = ssub.s32 %s29, %s41
      %s162 = ssub.s32 %s30, %s37
      %s163 = sor.u32 %s161, %s162
      %p164 = scmp.eq.s32.totalorder %s163, 0
      %s166 = sadd.s32 %s165, 1
      %s167 = scalar_select %p164, %s165, %s166
      %p170 = pneg %p164
      %p171 = scmp.eq.s32.totalorder %s22, 1
      %p172 = por %p170, %p171
      %p173 = scmp.ne.s32.totalorder %s165, %s168
      %p174 = scmp.eq.s32.totalorder %s22, 0
      %p175 = por %p173, %p174
      %p176 = scmp.ne.s32.totalorder %s165, %s168
      %p177 = scmp.eq.s32.totalorder %s27, 1
      %p178 = por %p176, %p177
      %p179 = scmp.ne.s32.totalorder %s168, %s169
      %p180 = scmp.eq.s32.totalorder %s27, 0
      %p181 = por %p179, %p180
      %p182 = scmp.ne.s32.totalorder %s168, %s169
      %p183 = scmp.eq.s32.totalorder %s28, 1
      %p184 = por %p182, %p183
      %p186 = scmp.ne.s32.totalorder %s169, %s185
      %p187 = scmp.eq.s32.totalorder %s28, 0
      %p188 = por %p186, %p187
      %p189 = scmp.le.s32.totalorder 1, %s22
      %p190 = scmp.lt.s32.totalorder %s22, 3
      %p191 = pnand %p189, %p190
      %p192 = pneg %p191
      // Predicated region
      $region9: #{tpu_custom_call.1} parent=5 // pred_check
        _
      $region10: #{tpu_custom_call.1} parent=5 // pred_check_branch
        %194 = sbr.rel (%p191) target = $region12
      $region11: #{tpu_custom_call.1} parent=5 // pred_region
        %s195 = ssub.s32 %s22, 1
        // Predicated region
        $region13: #{tpu_custom_call.1} parent=11 // pred_check
          %p196 = pneg %p111
        $region14: #{tpu_custom_call.1} parent=11 // pred_check_branch
          %198 = sbr.rel (%p196) target = $region16
        $region15: #{tpu_custom_call.1} parent=11 // pred_region
          %s200 = ssub.s32 64, 64
          %201 = vsyncadd [#allocation5], %s200
          %s203 = sshll.u32 %s2, 4
          %s204 = int_to_ptr.vmem [resolvable:$true] %s203
          %206 = dma.vmem_to_smem %s204, 64, [#allocation8], [#allocation5]
        $region16: #{tpu_custom_call.1} parent=11 // pred_fallthru
          _
        // Predicated region
        $region17: #{tpu_custom_call.1} parent=11 // pred_check
          %p207 = pneg %p132
        $region18: #{tpu_custom_call.1} parent=11 // pred_check_branch
          %209 = sbr.rel (%p207) target = $region20
        $region19: #{tpu_custom_call.1} parent=11 // pred_region
          %s211 = ssub.s32 64, 64
          %212 = vsyncadd [#allocation10], %s211
          %s214 = sshll.u32 %s3, 4
          %s215 = int_to_ptr.vmem [resolvable:$true] %s214
          %217 = dma.vmem_to_smem %s215, 64, [#allocation9], [#allocation10]
        $region20: #{tpu_custom_call.1} parent=11 // pred_fallthru
          _
        // Predicated region
        $region21: #{tpu_custom_call.1} parent=11 // pred_check
          %p218 = pneg %p153
        $region22: #{tpu_custom_call.1} parent=11 // pred_check_branch
          %220 = sbr.rel (%p218) target = $region24
        $region23: #{tpu_custom_call.1} parent=11 // pred_region
          %s222 = ssub.s32 16, 16
          %223 = vsyncadd [#allocation10], %s222
          %s225 = sshll.u32 %s4, 4
          %s226 = int_to_ptr.vmem [resolvable:$true] %s225
          %228 = dma.vmem_to_smem %s226, 16, [#allocation11], [#allocation10]
        $region24: #{tpu_custom_call.1} parent=11 // pred_fallthru
          _
      $region12: #{tpu_custom_call.1} parent=5 // pred_fallthru
        _
      %p229 = scmp.lt.s32.totalorder %s22, 2
      // Predicated region
      $region25: #{tpu_custom_call.1} parent=5 // pred_check
        %p230 = pneg %p229
      $region26: #{tpu_custom_call.1} parent=5 // pred_check_branch
        %232 = sbr.rel (%p230) target = $region28
      $region27: #{tpu_custom_call.1} parent=5 // pred_region
        // Predicated region
        $region29: #{tpu_custom_call.1} parent=27 // pred_check
          %p233 = pneg %p56
        $region30: #{tpu_custom_call.1} parent=27 // pred_check_branch
          %235 = sbr.rel (%p233) target = $region32
        $region31: #{tpu_custom_call.1} parent=27 // pred_region
          %s236 = sand.u32 %s46, 1
          %s237 = scalar_lea.sflag [#allocation3], %s236
          %s238 = sand.u32 %s46, 1
          %s239 = smul.addr %s238, 8
          %s240 = scalar_lea.vmem [#allocation2], %s239
          %s241 = smul.u32 2, %s30
          %s243 = ssub.s32 128, 128
          %244 = vsyncadd %s237, %s243
          %s245 = smul.addr %s29, 2
          %s246 = sadd.s32 %s241, %s245
          %s247 = smul.addr %s246, 64
          %s248 = scalar_lea.hbm %s0, %s247
          %s250 = sshll.u32 %s240, 4
          %s251 = int_to_ptr.vmem [resolvable:$true] %s250
          %253 = dma.hbm_to_vmem [thread:$0]  %s248, 128, %s251, %s237
        $region32: #{tpu_custom_call.1} parent=27 // pred_fallthru
          _
        // Predicated region
        $region33: #{tpu_custom_call.1} parent=27 // pred_check
          %p254 = pneg %p84
        $region34: #{tpu_custom_call.1} parent=27 // pred_check_branch
          %256 = sbr.rel (%p254) target = $region36
        $region35: #{tpu_custom_call.1} parent=27 // pred_region
          %s257 = sand.u32 %s74, 1
          %s258 = scalar_lea.sflag [#allocation7], %s257
          %s259 = sand.u32 %s74, 1
          %s260 = smul.addr %s259, 8
          %s261 = scalar_lea.vmem [#allocation6], %s260
          %s262 = smul.u32 2, %s30
          %s264 = ssub.s32 128, 128
          %265 = vsyncadd %s258, %s264
          %s266 = smul.addr %s29, 2
          %s267 = sadd.s32 %s262, %s266
          %s268 = smul.addr %s267, 64
          %s269 = scalar_lea.hbm %s1, %s268
          %s271 = sshll.u32 %s261, 4
          %s272 = int_to_ptr.vmem [resolvable:$true] %s271
          %274 = dma.hbm_to_vmem [thread:$0]  %s269, 128, %s272, %s258
        $region36: #{tpu_custom_call.1} parent=27 // pred_fallthru
          _
      $region28: #{tpu_custom_call.1} parent=5 // pred_fallthru
        _
      %p275 = scmp.le.s32.totalorder 1, %s22
      %p276 = scmp.lt.s32.totalorder %s22, 3
      %p277 = pnand %p275, %p276
      %p278 = pneg %p277
      // Predicated region
      $region37: #{tpu_custom_call.1} parent=5 // pred_check
        _
      $region38: #{tpu_custom_call.1} parent=5 // pred_check_branch
        %280 = sbr.rel (%p277) target = $region40
      $region39: #{tpu_custom_call.1} parent=5 // pred_region
        %s281 = ssub.s32 %s22, 1
        %s282 = sand.u32 %s49, 1
        %s283 = scalar_lea.sflag [#allocation3], %s282
        %s284 = sand.u32 %s49, 1
        %s285 = smul.addr %s284, 8
        %s286 = scalar_lea.vmem [#allocation2], %s285
        // Predicated region
        $region41: #{tpu_custom_call.1} parent=39 // pred_check
          %p287 = pneg %p62
        $region42: #{tpu_custom_call.1} parent=39 // pred_check_branch
          %289 = sbr.rel (%p287) target = $region44
        $region43: #{tpu_custom_call.1} parent=39 // pred_region
          %290 = dma.done %s283, 128
        $region44: #{tpu_custom_call.1} parent=39 // pred_fallthru
          _
        %s291 = sand.u32 %s77, 1
        %s292 = scalar_lea.sflag [#allocation7], %s291
        %s293 = sand.u32 %s77, 1
        %s294 = smul.addr %s293, 8
        %s295 = scalar_lea.vmem [#allocation6], %s294
        // Predicated region
        $region45: #{tpu_custom_call.1} parent=39 // pred_check
          %p296 = pneg %p90
        $region46: #{tpu_custom_call.1} parent=39 // pred_check_branch
          %298 = sbr.rel (%p296) target = $region48
        $region47: #{tpu_custom_call.1} parent=39 // pred_region
          %299 = dma.done %s292, 128
        $region48: #{tpu_custom_call.1} parent=39 // pred_fallthru
          _
        // Predicated region
        $region49: #{tpu_custom_call.1} parent=39 // pred_check
          %p300 = pneg %p111
        $region50: #{tpu_custom_call.1} parent=39 // pred_check_branch
          %302 = sbr.rel (%p300) target = $region52
        $region51: #{tpu_custom_call.1} parent=39 // pred_region
          %303 = dma.done [#allocation5], 64
        $region52: #{tpu_custom_call.1} parent=39 // pred_fallthru
          _
        // Predicated region
        $region53: #{tpu_custom_call.1} parent=39 // pred_check
          %p304 = pneg %p132
        $region54: #{tpu_custom_call.1} parent=39 // pred_check_branch
          %306 = sbr.rel (%p304) target = $region56
        $region55: #{tpu_custom_call.1} parent=39 // pred_region
          %307 = dma.done [#allocation10], 64
        $region56: #{tpu_custom_call.1} parent=39 // pred_fallthru
          _
        // Predicated region
        $region57: #{tpu_custom_call.1} parent=39 // pred_check
          %p308 = pneg %p153
        $region58: #{tpu_custom_call.1} parent=39 // pred_check_branch
          %310 = sbr.rel (%p308) target = $region60
        $region59: #{tpu_custom_call.1} parent=39 // pred_region
          %311 = dma.done [#allocation10], 16
        $region60: #{tpu_custom_call.1} parent=39 // pred_fallthru
          _
        %312 = sfence
        %s313 = sand.u32 %s49, 1
        %s314 = scalar_lea.sflag [#allocation3], %s313
        %s315 = sand.u32 %s49, 1
        %s316 = smul.addr %s315, 8
        %s317 = scalar_lea.vmem [#allocation2], %s316
        %p318 = pneg %p62
        %p319 = pneg %p59
        %s320 = sand.u32 %s77, 1
        %s321 = scalar_lea.sflag [#allocation7], %s320
        %s322 = sand.u32 %s77, 1
        %s323 = smul.addr %s322, 8
        %s324 = scalar_lea.vmem [#allocation6], %s323
        %p325 = pneg %p90
        %p326 = pneg %p87
        %p327 = pneg %p111
        %p328 = pneg %p108
        %p329 = pneg %p132
        %p330 = pneg %p129
        %p331 = pneg %p153
        %p332 = pneg %p150
        %p333 = pneg %p181
        %p334 = pneg %p178
        %s335 = sand.u32 %s168, 1
        %s336 = scalar_lea.sflag [#allocation4], %s335
        %s337 = sand.u32 %s168, 1
        %s338 = smul.addr %s337, 8
        %s339 = scalar_lea.vmem [#allocation12], %s338
        %s340 = smul.u32 2, %s32
        %s341 = smul.u32 2, %s32
        %s342 = smul.u32 2, %s32
        %v343 = vld [vmem:[%s286] sm:$0xff]
        %v344 = vld [vmem:[%s295] sm:$0xff]
        %s345 = sld [smem:[#allocation11]]
        %v346 = vstv %s345
        %v347 = vadd.f32 %v346, 0.0
        %s348 = sld [smem:[#allocation8]]
        %v349 = vstv %s348
        %v350 = vmul.f32 %v349, %v343
        %v351 = vadd.f32 %v347, %v350
        %s352 = sld [smem:[#allocation9]]
        %v353 = vstv %s352
        %v354 = vmul.f32 %v353, %v344
        %v355 = vadd.f32 %v351, %v354
        %s356 = sld [smem:[#allocation8 + $0x1]]
        %v357 = vstv %s356
        %v358 = vmul.f32 %v357, %v343
        %v360 = vrot.slane %v358, 5
        %v361 = vrot.slane %v360, 4
        %v363 = vadd.f32 %v355, %v361
        %s364 = sld [smem:[#allocation9 + $0x1]]
        %v365 = vstv %s364
        %v366 = vmul.f32 %v365, %v344
        %v368 = vrot.slane %v366, 5
        %v369 = vrot.slane %v368, 4
        %v371 = vadd.f32 %v363, %v369
        %s372 = sld [smem:[#allocation8 + $0x2]]
        %v373 = vstv %s372
        %v374 = vmul.f32 %v373, %v343
        %v376 = vrot.slane %v374, 6
        %v377 = vrot.slane %v376, 4
        %v379 = vadd.f32 %v371, %v377
        %s380 = sld [smem:[#allocation9 + $0x2]]
        %v381 = vstv %s380
        %v382 = vmul.f32 %v381, %v344
        %v384 = vrot.slane %v382, 6
        %v385 = vrot.slane %v384, 4
        %v387 = vadd.f32 %v379, %v385
        %s388 = sld [smem:[#allocation8 + $0x3]]
        %v389 = vstv %s388
        %v390 = vmul.f32 %v389, %v343
        %v392 = vrot.slane %v390, 7
        %v393 = vrot.slane %v392, 4
        %v395 = vadd.f32 %v387, %v393
        %s396 = sld [smem:[#allocation9 + $0x3]]
        %v397 = vstv %s396
        %v398 = vmul.f32 %v397, %v344
        %v400 = vrot.slane %v398, 7
        %v401 = vrot.slane %v400, 4
        %v403 = vadd.f32 %v395, %v401
        %s404 = sld [smem:[#allocation11 + $0x1]]
        %v405 = vstv %s404
        %v406 = vadd.f32 %v405, 0.0
        %s407 = sld [smem:[#allocation8 + $0x80]]
        %v408 = vstv %s407
        %v409 = vmul.f32 %v408, %v343
        %v410 = vadd.f32 %v406, %v409
        %s411 = sld [smem:[#allocation9 + $0x80]]
        %v412 = vstv %s411
        %v413 = vmul.f32 %v412, %v344
        %v414 = vadd.f32 %v410, %v413
        %s415 = sld [smem:[#allocation8 + $0x81]]
        %v416 = vstv %s415
        %v417 = vmul.f32 %v416, %v343
        %v419 = vrot.slane %v417, 5
        %v420 = vrot.slane %v419, 4
        %v422 = vadd.f32 %v414, %v420
        %s423 = sld [smem:[#allocation9 + $0x81]]
        %v424 = vstv %s423
        %v425 = vmul.f32 %v424, %v344
        %v427 = vrot.slane %v425, 5
        %v428 = vrot.slane %v427, 4
        %v430 = vadd.f32 %v422, %v428
        %s431 = sld [smem:[#allocation8 + $0x82]]
        %v432 = vstv %s431
        %v433 = vmul.f32 %v432, %v343
        %v435 = vrot.slane %v433, 6
        %v436 = vrot.slane %v435, 4
        %v438 = vadd.f32 %v430, %v436
        %s439 = sld [smem:[#allocation9 + $0x82]]
        %v440 = vstv %s439
        %v441 = vmul.f32 %v440, %v344
        %v443 = vrot.slane %v441, 6
        %v444 = vrot.slane %v443, 4
        %v446 = vadd.f32 %v438, %v444
        %s447 = sld [smem:[#allocation8 + $0x83]]
        %v448 = vstv %s447
        %v449 = vmul.f32 %v448, %v343
        %v451 = vrot.slane %v449, 7
        %v452 = vrot.slane %v451, 4
        %v454 = vadd.f32 %v446, %v452
        %s455 = sld [smem:[#allocation9 + $0x83]]
        %v456 = vstv %s455
        %v457 = vmul.f32 %v456, %v344
        %v459 = vrot.slane %v457, 7
        %v460 = vrot.slane %v459, 4
        %v462 = vadd.f32 %v454, %v460
        %s463 = sld [smem:[#allocation11 + $0x2]]
        %v464 = vstv %s463
        %v465 = vadd.f32 %v464, 0.0
        %s466 = sld [smem:[#allocation8 + $0x100]]
        %v467 = vstv %s466
        %v468 = vmul.f32 %v467, %v343
        %v469 = vadd.f32 %v465, %v468
        %s470 = sld [smem:[#allocation9 + $0x100]]
        %v471 = vstv %s470
        %v472 = vmul.f32 %v471, %v344
        %v473 = vadd.f32 %v469, %v472
        %s474 = sld [smem:[#allocation8 + $0x101]]
        %v475 = vstv %s474
        %v476 = vmul.f32 %v475, %v343
        %v478 = vrot.slane %v476, 5
        %v479 = vrot.slane %v478, 4
        %v481 = vadd.f32 %v473, %v479
        %s482 = sld [smem:[#allocation9 + $0x101]]
        %v483 = vstv %s482
        %v484 = vmul.f32 %v483, %v344
        %v486 = vrot.slane %v484, 5
        %v487 = vrot.slane %v486, 4
        %v489 = vadd.f32 %v481, %v487
        %s490 = sld [smem:[#allocation8 + $0x102]]
        %v491 = vstv %s490
        %v492 = vmul.f32 %v491, %v343
        %v494 = vrot.slane %v492, 6
        %v495 = vrot.slane %v494, 4
        %v497 = vadd.f32 %v489, %v495
        %s498 = sld [smem:[#allocation9 + $0x102]]
        %v499 = vstv %s498
        %v500 = vmul.f32 %v499, %v344
        %v502 = vrot.slane %v500, 6
        %v503 = vrot.slane %v502, 4
        %v505 = vadd.f32 %v497, %v503
        %s506 = sld [smem:[#allocation8 + $0x103]]
        %v507 = vstv %s506
        %v508 = vmul.f32 %v507, %v343
        %v510 = vrot.slane %v508, 7
        %v511 = vrot.slane %v510, 4
        %v513 = vadd.f32 %v505, %v511
        %s514 = sld [smem:[#allocation9 + $0x103]]
        %v515 = vstv %s514
        %v516 = vmul.f32 %v515, %v344
        %v518 = vrot.slane %v516, 7
        %v519 = vrot.slane %v518, 4
        %v521 = vadd.f32 %v513, %v519
        %s522 = sld [smem:[#allocation11 + $0x3]]
        %v523 = vstv %s522
        %v524 = vadd.f32 %v523, 0.0
        %s525 = sld [smem:[#allocation8 + $0x180]]
        %v526 = vstv %s525
        %v527 = vmul.f32 %v526, %v343
        %v528 = vadd.f32 %v524, %v527
        %s529 = sld [smem:[#allocation9 + $0x180]]
        %v530 = vstv %s529
        %v531 = vmul.f32 %v530, %v344
        %v532 = vadd.f32 %v528, %v531
        %s533 = sld [smem:[#allocation8 + $0x181]]
        %v534 = vstv %s533
        %v535 = vmul.f32 %v534, %v343
        %v537 = vrot.slane %v535, 5
        %v538 = vrot.slane %v537, 4
        %v540 = vadd.f32 %v532, %v538
        %s541 = sld [smem:[#allocation9 + $0x181]]
        %v542 = vstv %s541
        %v543 = vmul.f32 %v542, %v344
        %v545 = vrot.slane %v543, 5
        %v546 = vrot.slane %v545, 4
        %v548 = vadd.f32 %v540, %v546
        %s549 = sld [smem:[#allocation8 + $0x182]]
        %v550 = vstv %s549
        %v551 = vmul.f32 %v550, %v343
        %v553 = vrot.slane %v551, 6
        %v554 = vrot.slane %v553, 4
        %v556 = vadd.f32 %v548, %v554
        %s557 = sld [smem:[#allocation9 + $0x182]]
        %v558 = vstv %s557
        %v559 = vmul.f32 %v558, %v344
        %v561 = vrot.slane %v559, 6
        %v562 = vrot.slane %v561, 4
        %v564 = vadd.f32 %v556, %v562
        %s565 = sld [smem:[#allocation8 + $0x183]]
        %v566 = vstv %s565
        %v567 = vmul.f32 %v566, %v343
        %v569 = vrot.slane %v567, 7
        %v570 = vrot.slane %v569, 4
        %v572 = vadd.f32 %v564, %v570
        %s573 = sld [smem:[#allocation9 + $0x183]]
        %v574 = vstv %s573
        %v575 = vmul.f32 %v574, %v344
        %v577 = vrot.slane %v575, 7
        %v578 = vrot.slane %v577, 4
        %v580 = vadd.f32 %v572, %v578
        %v582 = vlaneseq
        %v583 = vshrl.u32 %v582, 7
        %v584 = vsub.s32 0, %v583
        %v585 = vrot.slane %v403, %v584
        %v586 = vlaneseq
        %v587 = vshrl.u32 %v586, 7
        %v588 = vsub.s32 4, %v587
        %v589 = vrot.slane %v403, %v588
        %v593 = vlaneseq
        %v594 = vshrl.u32 %v593, 7
        %v595 = vsub.s32 0, %v594
        %v596 = vrot.slane %v462, %v595
        %v597 = vlaneseq
        %v598 = vshrl.u32 %v597, 7
        %v599 = vsub.s32 4, %v598
        %v600 = vrot.slane %v462, %v599
        %v604 = vlaneseq
        %v605 = vshrl.u32 %v604, 7
        %v606 = vsub.s32 0, %v605
        %v607 = vrot.slane %v521, %v606
        %v608 = vlaneseq
        %v609 = vshrl.u32 %v608, 7
        %v610 = vsub.s32 4, %v609
        %v611 = vrot.slane %v521, %v610
        %v615 = vlaneseq
        %v616 = vshrl.u32 %v615, 7
        %v617 = vsub.s32 0, %v616
        %v618 = vrot.slane %v580, %v617
        %v619 = vlaneseq
        %v620 = vshrl.u32 %v619, 7
        %v621 = vsub.s32 4, %v620
        %v622 = vrot.slane %v580, %v621
        %vm625 = vcmask 1040384
        %v626 = vsel %vm625, %v585, %v596
        %v627 = vsel %vm625, %v589, %v600
        %vm628 = vcmask 1041408
        %v629 = vsel %vm628, %v626, %v607
        %v630 = vsel %vm628, %v627, %v611
        %vm631 = vcmask 1042432
        %v632 = vsel %vm631, %v629, %v618
        %v633 = vsel %vm631, %v630, %v622
        %v636 = vcombine.low %v632, %v633
        %638 = vst [vmem:[%s339] sm:$0xff] %v636
        %s639 = sand.u32 %s168, 1
        %s640 = scalar_lea.sflag [#allocation4], %s639
        %s641 = sand.u32 %s168, 1
        %s642 = smul.addr %s641, 8
        %s643 = scalar_lea.vmem [#allocation12], %s642
        // Predicated region
        $region61: #{tpu_custom_call.1} parent=39 // pred_check
          %p644 = pneg %p178
        $region62: #{tpu_custom_call.1} parent=39 // pred_check_branch
          %646 = sbr.rel (%p644) target = $region64
        $region63: #{tpu_custom_call.1} parent=39 // pred_region
          %s647 = smul.u32 2, %s32
          %s649 = ssub.s32 128, 128
          %650 = vsyncadd %s640, %s649
          %s651 = smul.addr %s31, 2
          %s652 = sadd.s32 %s647, %s651
          %s653 = smul.addr %s652, 64
          %s654 = scalar_lea.hbm %s5, %s653
          %s656 = sshll.u32 %s643, 4
          %s657 = int_to_ptr.vmem [resolvable:$true] %s656
          %659 = dma.vmem_to_hbm [thread:$0]  %s657, 128, %s654, %s640
        $region64: #{tpu_custom_call.1} parent=39 // pred_fallthru
          _
      $region40: #{tpu_custom_call.1} parent=5 // pred_fallthru
        _
      %p660 = scmp.le.s32.totalorder 2, %s22
      // Predicated region
      $region65: #{tpu_custom_call.1} parent=5 // pred_check
        %p661 = pneg %p660
      $region66: #{tpu_custom_call.1} parent=5 // pred_check_branch
        %663 = sbr.rel (%p661) target = $region68
      $region67: #{tpu_custom_call.1} parent=5 // pred_region
        %s664 = ssub.s32 %s22, 2
        // Predicated region
        $region69: #{tpu_custom_call.1} parent=67 // pred_check
          %p665 = pneg %p184
        $region70: #{tpu_custom_call.1} parent=67 // pred_check_branch
          %667 = sbr.rel (%p665) target = $region72
        $region71: #{tpu_custom_call.1} parent=67 // pred_region
          %s668 = sand.u32 %s169, 1
          %s669 = scalar_lea.sflag [#allocation4], %s668
          %s670 = sand.u32 %s169, 1
          %s671 = smul.addr %s670, 8
          %s672 = scalar_lea.vmem [#allocation12], %s671
          %673 = dma.done %s669, 128
        $region72: #{tpu_custom_call.1} parent=67 // pred_fallthru
          _
      $region68: #{tpu_custom_call.1} parent=5 // pred_fallthru
        _
    $region6: #{tpu_custom_call.1} parent=1 // loop_footer
      %s26 = sadd.s32 1, %s22
    $region7: #{tpu_custom_call.1} parent=1 // loop_footer_branch
      %21 = sbr.rel target = $region3
    $region8: #{tpu_custom_call.1} parent=1 // loop_exit
      _
    %674 = vsyncpa [#allocation3], 1
    %s675 = scalar_lea.sflag [#allocation3], 1
    %676 = vsyncpa %s675, 1
    %677 = vsyncpa [#allocation7], 1
    %s678 = scalar_lea.sflag [#allocation7], 1
    %679 = vsyncpa %s678, 1
    %680 = vsyncpa [#allocation4], 1
    %s681 = scalar_lea.sflag [#allocation4], 1
    %682 = vsyncpa %s681, 1
    %683 = vsyncpa [#allocation5], 1
    %s684 = scalar_lea.sflag [#allocation5], 1
    %685 = vsyncpa %s684, 1
    %686 = vsyncpa [#allocation10], 1

</llo_original>
